<compile_context>
chip_gen: v6e
topology: v6e:2x2x1
jax: 0.10.0
libtpu: 0.0.40
codegen_flags: <defaults>
</compile_context>

<pallas_src>
import functools

import jax
import jax.numpy as jnp
from jax import lax
from jax.experimental import pallas as pl
from jax.experimental.pallas import tpu as pltpu


_NEG_BIG = -1e30  # finite stand-in for -inf (never produces inf-inf -> NaN)


def _round_up(x: int, m: int) -> int:
    return ((x + m - 1) // m) * m


def _pick_tile(preferred: int, total: int) -> int:
    """Largest multiple of 128 <= preferred that divides total (total % 128 == 0)."""
    t = max(128, min(int(preferred), total))
    t = (t // 128) * 128
    while total % t:
        t -= 128
    return t


# -----------------------------------------------------------------------------
# Prologue: one pass over HBM that hoists all per-row work out of the O(B^2 D)
# loop -- row-normalize q and k, fold 1/nce_T into q, cast to the MXU dtype.
# -----------------------------------------------------------------------------
def _normalize_kernel(q_ref, k_ref, qn_ref, kn_ref, *, inv_T):
    eps2 = jnp.float32(1e-8 * 1e-8)  # CosineSimilarity eps, squared
    q = q_ref[...].astype(jnp.float32)
    k = k_ref[...].astype(jnp.float32)
    # 1/max(||x||, eps) == rsqrt(max(||x||^2, eps^2))  (EUP rsqrt, VPU muls).
    # NOTE: PyTorch clamps the *product* of norms with eps; identical except for
    # near-zero feature rows.
    inv_q = lax.rsqrt(jnp.maximum(jnp.sum(q * q, axis=-1, keepdims=True), eps2))
    inv_k = lax.rsqrt(jnp.maximum(jnp.sum(k * k, axis=-1, keepdims=True), eps2))
    # Fold 1/nce_T into normalized q: logits come out of the MXU pre-scaled.
    qn_ref[...] = (q * (inv_q * jnp.float32(inv_T))).astype(qn_ref.dtype)
    kn_ref[...] = (k * inv_k).astype(kn_ref.dtype)


# -----------------------------------------------------------------------------
# Main kernel: one (q-tile, k-tile) step of the streamed PatchNCE loss.
#   qnT_ref : (D_pad, tile_q)  pre-normalized q, 1/T folded, transposed (resident per q tile)
#   kn_ref  : (tile_k, D_pad)  pre-normalized k (streamed, or whole-resident)
#   loss_ref: (1, tile_q)      lane-dense output
#   m/l/pos : (1, tile_q)      running max / running sum-exp / positive logit
# -----------------------------------------------------------------------------
def _patchnce_kernel(qnT_ref, kn_ref, loss_ref, m_ref, l_ref, pos_ref, *,
                     tile_q, tile_k, b_valid, has_pad, diag_fill):
    qi = pl.program_id(0)
    kj = pl.program_id(1)
    q_start = qi * tile_q
    k_start = kj * tile_k

    # ---- per-q-tile init (first k step only) --------------------------------
    @pl.when(kj == 0)
    def _init():
        m_ref[...] = jnp.full(m_ref.shape, _NEG_BIG, m_ref.dtype)
        l_ref[...] = jnp.zeros(l_ref.shape, l_ref.dtype)
        pos_ref[...] = jnp.zeros(pos_ref.shape, pos_ref.dtype)

    # s[a, b] = cos(k_{k_start+a}, q_{q_start+b}) / nce_T -- canonical MXU
    # contraction (tile_k, D) @ (D, tile_q); f32 accumulation.
    s = jnp.dot(kn_ref[...], qnT_ref[...], preferred_element_type=jnp.float32)

    if has_pad:
        # Zero-padded k rows produce logit 0 for every q row; neutralize them
        # exactly with one (tile_k, 1) column bias + one broadcast add.
        kg_col = lax.broadcasted_iota(jnp.int32, (tile_k, 1), 0) + k_start
        s = s + jnp.where(kg_col >= b_valid, jnp.float32(_NEG_BIG), jnp.float32(0.0))

    def _accumulate(sv):
        # Online logsumexp over the k (sublane) axis; stats are lane-dense.
        m_prev = m_ref[...]
        m_new = jnp.maximum(m_prev, jnp.max(sv, axis=0, keepdims=True))
        l_ref[...] = (jnp.exp(m_prev - m_new) * l_ref[...]
                      + jnp.sum(jnp.exp(sv - m_new), axis=0, keepdims=True))
        m_ref[...] = m_new

    # Diagonal handling only on tiles whose k range overlaps this q tile's range.
    overlaps_diag = jnp.logical_and(k_start < q_start + tile_q,
                                    k_start + tile_k > q_start)

    @pl.when(overlaps_diag)
    def _diag_tile():
        kg = lax.broadcasted_iota(jnp.int32, (tile_k, tile_q), 0) + k_start
        qg = lax.broadcasted_iota(jnp.int32, (tile_k, tile_q), 1) + q_start
        on_diag = kg == qg
        # l_pos read off the MXU output's diagonal (accumulated: a q tile's
        # diagonal may span several k tiles when tile_q > tile_k).
        pos_ref[...] = pos_ref[...] + jnp.sum(jnp.where(on_diag, s, 0.0),
                                              axis=0, keepdims=True)
        # masked_fill(-10.0) applied BEFORE the exp/sum accumulation -> no
        # subtract-then-add cancellation on l.
        _accumulate(jnp.where(on_diag, jnp.float32(diag_fill), s))

    @pl.when(jnp.logical_not(overlaps_diag))
    def _off_diag_tile():
        _accumulate(s)

    # ---- finalize: loss = logsumexp([pos, negs]) - pos ----------------------
    @pl.when(kj == pl.num_programs(1) - 1)
    def _finalize():
        pos = pos_ref[...]
        m = m_ref[...]
        m_tot = jnp.maximum(m, pos)
        denom = l_ref[...] * jnp.exp(m - m_tot) + jnp.exp(pos - m_tot)
        loss_ref[...] = (m_tot + jnp.log(denom) - pos).astype(loss_ref.dtype)


def patchnce_loss(feat_q, feat_k, nce_T=0.07, *, tile_q=None, tile_k=None,
                  matmul_dtype=jnp.float32):
    """PatchNCELoss.forward: feat_q, feat_k of shape (B, D) -> loss of shape (B,).

    tile_q:        resident q-tile edge (multiple of 128); default 512.
    tile_k:        streamed k-tile edge; default: whole-resident k when it fits
                   the VMEM budget (k read from HBM once), else 256.
    matmul_dtype:  MXU operand dtype.  float32 (default) matches the PyTorch
                   reference to ~1e-5; jnp.bfloat16 gives 2-4x MXU throughput
                   and halves streamed-k HBM bytes (loss matches to ~1e-2,
                   fine for training).  Softmax math is always f32.
    """
    B, D = feat_q.shape
    assert feat_k.shape == (B, D)
    inv_T = float(1.0 / float(nce_T))
    mm_dtype = jnp.dtype(matmul_dtype)
    mm_size = mm_dtype.itemsize

    B_pad = _round_up(max(B, 1), 128)
    D_pad = _round_up(D, 128)

    q, k = feat_q, feat_k
    if (B_pad, D_pad) != (B, D):
        # TODO(synk): fuse this pad into the normalization prologue to save one
        # extra HBM read+write of q/k when shapes are unaligned.
        q = jnp.pad(q, ((0, B_pad - B), (0, D_pad - D)))
        k = jnp.pad(k, ((0, B_pad - B), (0, D_pad - D)))

    # ---- prologue: normalize + fold 1/T + cast, one pass over HBM -----------
    tile_n = _pick_tile(256 if D_pad <= 1024 else 128, B_pad)
    qn, kn = pl.pallas_call(
        functools.partial(_normalize_kernel, inv_T=inv_T),
        out_shape=(jax.ShapeDtypeStruct((B_pad, D_pad), mm_dtype),
                   jax.ShapeDtypeStruct((B_pad, D_pad), mm_dtype)),
        grid_spec=pltpu.PrefetchScalarGridSpec(
            num_scalar_prefetch=0,
            grid=(B_pad // tile_n,),
            in_specs=[pl.BlockSpec((tile_n, D_pad), lambda i: (i, 0)),
                      pl.BlockSpec((tile_n, D_pad), lambda i: (i, 0))],
            out_specs=[pl.BlockSpec((tile_n, D_pad), lambda i: (i, 0)),
                       pl.BlockSpec((tile_n, D_pad), lambda i: (i, 0))],
        ),
        compiler_params=pltpu.CompilerParams(dimension_semantics=("parallel",)),
    )(q, k)

    # Present normalized q transposed (D_pad, B_pad) so the main kernel runs the
    # canonical (tile_k, D) @ (D, tile_q) MXU contraction with no per-step (or
    # per-q-tile) relayout.  Layout plumbing: one small XLA pass over qn only.
    qnT = jnp.swapaxes(qn, 0, 1)

    # ---- tile selection (sized for v7x's 64 MiB VMEM; fits v5e/v6e too) ------
    tq = _pick_tile(512 if tile_q is None else tile_q, B_pad)
    if tile_k is None:
        # Fully-resident kn fast path: k read from HBM exactly once.
        resident_need = (2 * B_pad * D_pad * mm_size      # kn (double-buffered)
                         + 2 * D_pad * tq * mm_size       # qnT (double-buffered)
                         + 6 * B_pad * tq * 4)            # s / exp temporaries
        tk = B_pad if resident_need <= (20 << 20) else _pick_tile(256, B_pad)
    else:
        tk = _pick_tile(tile_k, B_pad)

    n_q = B_pad // tq
    n_k = B_pad // tk
    has_pad = B_pad != B

    # Conservative per-core VMEM estimate -> explicit scoped limit
    # (>= every chip's default, <= v7x's 64 MiB physical).
    est_vmem = (2 * D_pad * tq * mm_size        # qnT blocks
                + 2 * tk * D_pad * mm_size      # streamed kn blocks
                + 6 * tk * tq * 4               # s / exp / mask temporaries
                + 8 * tq * 4)                   # stats scratch + output
    vmem_limit = int(min(max(int(est_vmem * 1.5), 32 << 20), 48 << 20))

    kernel = functools.partial(
        _patchnce_kernel,
        tile_q=tq, tile_k=tk, b_valid=B, has_pad=has_pad,
        diag_fill=float(-10.0 * inv_T),   # masked_fill value, pre-scaled by 1/T
    )

    out = pl.pallas_call(
        kernel,
        out_shape=jax.ShapeDtypeStruct((1, B_pad), jnp.float32),
        grid_spec=pltpu.PrefetchScalarGridSpec(
            num_scalar_prefetch=0,
            grid=(n_q, n_k),                            # reduction (k) axis last
            in_specs=[
                # resident per q tile (fetched once per i, held across all j)
                pl.BlockSpec((D_pad, tq), lambda i, j: (0, i)),
                # streamed k tiles (whole-array resident when tk == B_pad).
                # If a profile shows exposed DMA here, add pipeline_mode=pl.Buffered(3).
                pl.BlockSpec((tk, D_pad), lambda i, j: (j, 0)),
            ],
            out_specs=pl.BlockSpec((1, tq), lambda i, j: (0, i)),   # lane-dense
            scratch_shapes=[
                pltpu.VMEM((1, tq), jnp.float32),   # running max m
                pltpu.VMEM((1, tq), jnp.float32),   # running sum-exp l
                pltpu.VMEM((1, tq), jnp.float32),   # positive logit (diag of MXU out)
            ],
        ),
        compiler_params=pltpu.CompilerParams(
            # q tiles shard across the 2 TensorCores on v7x; no-op on v5e/v6e.
            # (If a v7x profile shows one idle core, switch to pltpu.CORE_PARALLEL.)
            dimension_semantics=("parallel", "arbitrary"),
            vmem_limit_bytes=vmem_limit,
        ),
    )(qnT, kn)

    return out[0, :B]


def _reference_patchnce(feat_q, feat_k, nce_T=0.07):
    """Pure-JAX reference mirroring the PyTorch forward, for sanity checking."""
    eps = 1e-8
    qn = feat_q / jnp.maximum(jnp.linalg.norm(feat_q, axis=-1, keepdims=True), eps)
    kn = feat_k / jnp.maximum(jnp.linalg.norm(feat_k, axis=-1, keepdims=True), eps)
    l_pos = jnp.sum(qn * kn, axis=-1, keepdims=True)
    l_neg = qn @ kn.T
    Bv = l_neg.shape[0]
    l_neg = jnp.where(jnp.eye(Bv, dtype=bool), -10.0, l_neg)
    out = jnp.concatenate([l_pos, l_neg], axis=1) / nce_T
    return jax.nn.logsumexp(out, axis=1) - out[:, 0]


if __name__ == "__main__":
    nce_T = 0.07
    key = jax.random.PRNGKey(0)
    k1, k2, k3, k4 = jax.random.split(key, 4)

    # Case 1: small shapes (single 128-tile, resident-k path, pad + diag handling).
    B, D = 8, 32
    feat_q = jax.random.normal(k1, (B, D), dtype=jnp.float32)
    feat_k = jax.random.normal(k2, (B, D), dtype=jnp.float32)
    loss = jax.block_until_ready(patchnce_loss(feat_q, feat_k, nce_T=nce_T))
    ref = _reference_patchnce(feat_q, feat_k, nce_T=nce_T)
    assert loss.shape == (B,)
    assert jnp.allclose(loss, ref, atol=1e-4, rtol=1e-4), (loss, ref)

    # Case 2: multi-tile streamed path (2x2 grid: init / off-diag / diag / pad / finalize).
    B2, D2 = 200, 48
    fq2 = jax.random.normal(k3, (B2, D2), dtype=jnp.float32)
    fk2 = jax.random.normal(k4, (B2, D2), dtype=jnp.float32)
    loss2 = jax.block_until_ready(
        patchnce_loss(fq2, fk2, nce_T=nce_T, tile_q=128, tile_k=128))
    ref2 = _reference_patchnce(fq2, fk2, nce_T=nce_T)
    assert loss2.shape == (B2,)
    assert jnp.allclose(loss2, ref2, atol=1e-4, rtol=1e-4), (loss2, ref2)

    # Case 3: bf16 MXU operands (training-path option); softmax math stays f32.
    loss_bf16 = jax.block_until_ready(
        patchnce_loss(feat_q, feat_k, nce_T=nce_T, matmul_dtype=jnp.bfloat16))
    assert jnp.allclose(loss_bf16, ref, atol=2e-1, rtol=5e-2), (loss_bf16, ref)

    print("KERNEL_OK")
</pallas_src>

<mosaic_0001>
module attributes {stable_mosaic.version = 11 : i64} {
  func.func @_normalize_kernel(%arg0: i32, %arg1: memref<128x128xf32, #tpu.memory_space<vmem>>, %arg2: memref<128x128xf32, #tpu.memory_space<vmem>>, %arg3: memref<128x128xf32, #tpu.memory_space<vmem>>, %arg4: memref<128x128xf32, #tpu.memory_space<vmem>>) attributes {dimension_semantics = [#tpu.dimension_semantics<parallel>], iteration_bounds = array<i64: 1>, scalar_prefetch = 0 : i64, scratch_operands = 0 : i64, tpu.core_type = #tpu.core_type<tc>, window_params = [{transform_indices = @transform_0, window_bounds = array<i64: 128, 128>}, {transform_indices = @transform_1, window_bounds = array<i64: 128, 128>}, {transform_indices = @transform_2, window_bounds = array<i64: 128, 128>}, {transform_indices = @transform_3, window_bounds = array<i64: 128, 128>}]} {
    %c0 = arith.constant 0 : index
    %c0_0 = arith.constant 0 : index
    %0 = vector.load %arg1[%c0, %c0_0] : memref<128x128xf32, #tpu.memory_space<vmem>>, vector<128x128xf32>
    %c0_1 = arith.constant 0 : index
    %c0_2 = arith.constant 0 : index
    %1 = vector.load %arg2[%c0_1, %c0_2] : memref<128x128xf32, #tpu.memory_space<vmem>>, vector<128x128xf32>
    %2 = arith.mulf %0, %0 : vector<128x128xf32>
    %cst = arith.constant dense<0.000000e+00> : vector<128xf32>
    %3 = vector.multi_reduction <add>, %2, %cst [1] : vector<128x128xf32> to vector<128xf32>
    %4 = vector.shape_cast %3 : vector<128xf32> to vector<128x1xf32>
    %cst_3 = arith.constant 1.000000e-16 : f32
    %5 = vector.broadcast %cst_3 : f32 to vector<128x1xf32>
    %6 = arith.maximumf %4, %5 : vector<128x1xf32>
    %7 = math.rsqrt %6 : vector<128x1xf32>
    %8 = arith.mulf %1, %1 : vector<128x128xf32>
    %cst_4 = arith.constant dense<0.000000e+00> : vector<128xf32>
    %9 = vector.multi_reduction <add>, %8, %cst_4 [1] : vector<128x128xf32> to vector<128xf32>
    %10 = vector.shape_cast %9 : vector<128xf32> to vector<128x1xf32>
    %cst_5 = arith.constant 1.000000e-16 : f32
    %11 = vector.broadcast %cst_5 : f32 to vector<128x1xf32>
    %12 = arith.maximumf %10, %11 : vector<128x1xf32>
    %13 = math.rsqrt %12 : vector<128x1xf32>
    %cst_6 = arith.constant 14.2857141 : f32
    %14 = vector.broadcast %cst_6 : f32 to vector<128x1xf32>
    %15 = arith.mulf %7, %14 : vector<128x1xf32>
    %16 = vector.broadcast %15 : vector<128x1xf32> to vector<128x128xf32>
    %17 = arith.mulf %0, %16 : vector<128x128xf32>
    %c0_7 = arith.constant 0 : index
    %c0_8 = arith.constant 0 : index
    %18 = vector.load %arg3[%c0_7, %c0_8] : memref<128x128xf32, #tpu.memory_space<vmem>>, vector<128x128xf32>
    tpu.vector_store %arg3[%c0_7, %c0_8], %17 {strides = array<i32>} : memref<128x128xf32, #tpu.memory_space<vmem>>, vector<128x128xf32>,
    %19 = vector.broadcast %13 : vector<128x1xf32> to vector<128x128xf32>
    %20 = arith.mulf %1, %19 : vector<128x128xf32>
    %c0_9 = arith.constant 0 : index
    %c0_10 = arith.constant 0 : index
    %21 = vector.load %arg4[%c0_9, %c0_10] : memref<128x128xf32, #tpu.memory_space<vmem>>, vector<128x128xf32>
    tpu.vector_store %arg4[%c0_9, %c0_10], %20 {strides = array<i32>} : memref<128x128xf32, #tpu.memory_space<vmem>>, vector<128x128xf32>,
    return
  }
  func.func @transform_0(%arg0: i32) -> (i32, i32) {
    %c0_i32 = arith.constant 0 : i32
    %c0_i32_0 = arith.constant 0 : i32
    return %arg0, %c0_i32 : i32, i32
  }
  func.func @transform_1(%arg0: i32) -> (i32, i32) {
    %c0_i32 = arith.constant 0 : i32
    %c0_i32_0 = arith.constant 0 : i32
    return %arg0, %c0_i32 : i32, i32
  }
  func.func @transform_2(%arg0: i32) -> (i32, i32) {
    %c0_i32 = arith.constant 0 : i32
    %c0_i32_0 = arith.constant 0 : i32
    return %arg0, %c0_i32 : i32, i32
  }
  func.func @transform_3(%arg0: i32) -> (i32, i32) {
    %c0_i32 = arith.constant 0 : i32
    %c0_i32_0 = arith.constant 0 : i32
    return %arg0, %c0_i32 : i32, i32
  }
}

</mosaic_0001>

<llo_original>
// kernel: tpu_custom_call.1
$region0: #{tpu_custom_call.1}
  #allocation0 [shape = 'u32[]', space=smem, size = 0x4, offset = 0x4, fixed_abs, tag = 'smem constant byte address 0x4 - core index']
  #allocation1 [shape = 'u32[144,128]{1,0:T(1,128)}', space=vmem, size = 0x12000, scoped, tag = 'internal scratch']
  %s0 = inlined_call_operand.hbm [shape: f32[128,128], index: 0, kind: input, shape index: {}]
  %s1 = inlined_call_operand.hbm [shape: f32[128,128], index: 1, kind: input, shape index: {}]
  %s2 = inlined_call_operand.hbm [shape: f32[128,128], index: 2, kind: output, shape index: {0}]
  %s3 = inlined_call_operand.hbm [shape: f32[128,128], index: 3, kind: output, shape index: {1}]
  %4 = xla_tuple %s2, %s3
  %s5 = sld [smem:[#allocation0]]
  $region34: #{tpu_custom_call.1} parent=0
    _
  %s7 = ssub.s32 1, %s5
  %s8 = scalar_select 0, %s7, %s5
  $region1: #{tpu_custom_call.1} parent=0
    #allocation2 [shape = 'u8[65536]{0}', space=vmem, size = 0x10000, scoped, tag = 'input window, operand 0, single buffered']
    #allocation3 [shape = 's32[1]{0}', space=sflag, size = 0x4, scoped, tag = 'scoped memory for tpu_custom_call.1']
    #allocation4 [shape = 's32[1]{0}', space=sflag, size = 0x4, scoped, tag = 'scoped memory for tpu_custom_call.1']
    #allocation5 [shape = 'u8[65536]{0}', space=vmem, size = 0x10000, scoped, tag = 'input window, operand 1, single buffered']
    #allocation6 [shape = 's32[1]{0}', space=sflag, size = 0x4, scoped, tag = 'scoped memory for tpu_custom_call.1']
    #allocation7 [shape = 'u8[65536]{0}', space=vmem, size = 0x10000, scoped, tag = 'output window, operand 0, single buffered']
    #allocation8 [shape = 'u8[65536]{0}', space=vmem, size = 0x10000, scoped, tag = 'output window, operand 1, single buffered']
    #allocation9 [shape = 's32[1]{0}', space=sflag, size = 0x4, scoped, tag = 'scoped memory for tpu_custom_call.1']
    %9 = vsyncpa [#allocation3], 0
    %10 = vsyncpa [#allocation6], 0
    %11 = vsyncpa [#allocation4], 0
    %12 = vsyncpa [#allocation9], 0
    // Predicated region
    $region2: #{tpu_custom_call.1} parent=1 // pred_check
      _
    $region3: #{tpu_custom_call.1} parent=1 // pred_check_branch
      %14 = sbr.rel (0) target = $region5
    $region4: #{tpu_custom_call.1} parent=1 // pred_region
      %s16 = ssub.s32 2048, 2048
      %17 = vsyncadd [#allocation3], %s16
      %s18 = sshll.u32 [#allocation2], 4
      %s19 = int_to_ptr.vmem [resolvable:$true] %s18
      %24 = dma.hbm_to_vmem [thread:$0]  %s0, 2048, %s19, [#allocation3], 128, 128, 8
    $region5: #{tpu_custom_call.1} parent=1 // pred_fallthru
      _
    // Predicated region
    $region6: #{tpu_custom_call.1} parent=1 // pred_check
      _
    $region7: #{tpu_custom_call.1} parent=1 // pred_check_branch
      %26 = sbr.rel (0) target = $region9
    $region8: #{tpu_custom_call.1} parent=1 // pred_region
      %s28 = ssub.s32 2048, 2048
      %29 = vsyncadd [#allocation6], %s28
      %s30 = sshll.u32 [#allocation5], 4
      %s31 = int_to_ptr.vmem [resolvable:$true] %s30
      %36 = dma.hbm_to_vmem [thread:$0]  %s1, 2048, %s31, [#allocation6], 128, 128, 8
    $region9: #{tpu_custom_call.1} parent=1 // pred_fallthru
      _
    // Predicated region
    $region10: #{tpu_custom_call.1} parent=1 // pred_check
      _
    $region11: #{tpu_custom_call.1} parent=1 // pred_check_branch
      %38 = sbr.rel (0) target = $region13
    $region12: #{tpu_custom_call.1} parent=1 // pred_region
      %39 = dma.done [#allocation3], 2048
    $region13: #{tpu_custom_call.1} parent=1 // pred_fallthru
      _
    // Predicated region
    $region14: #{tpu_custom_call.1} parent=1 // pred_check
      _
    $region15: #{tpu_custom_call.1} parent=1 // pred_check_branch
      %41 = sbr.rel (0) target = $region17
    $region16: #{tpu_custom_call.1} parent=1 // pred_region
      %42 = dma.done [#allocation6], 2048
    $region17: #{tpu_custom_call.1} parent=1 // pred_fallthru
      _
    %v43 = vld [vmem:[#allocation2] sm:$0xff]
    %v44 = vld [vmem:[#allocation2 + $0x8] sm:$0xff]
    %v45 = vld [vmem:[#allocation2 + $0x10] sm:$0xff]
    %v46 = vld [vmem:[#allocation2 + $0x18] sm:$0xff]
    %v47 = vld [vmem:[#allocation2 + $0x20] sm:$0xff]
    %v48 = vld [vmem:[#allocation2 + $0x28] sm:$0xff]
    %v49 = vld [vmem:[#allocation2 + $0x30] sm:$0xff]
    %v50 = vld [vmem:[#allocation2 + $0x38] sm:$0xff]
    %v51 = vld [vmem:[#allocation2 + $0x40] sm:$0xff]
    %v52 = vld [vmem:[#allocation2 + $0x48] sm:$0xff]
    %v53 = vld [vmem:[#allocation2 + $0x50] sm:$0xff]
    %v54 = vld [vmem:[#allocation2 + $0x58] sm:$0xff]
    %v55 = vld [vmem:[#allocation2 + $0x60] sm:$0xff]
    %v56 = vld [vmem:[#allocation2 + $0x68] sm:$0xff]
    %v57 = vld [vmem:[#allocation2 + $0x70] sm:$0xff]
    %v58 = vld [vmem:[#allocation2 + $0x78] sm:$0xff]
    %v59 = vld [vmem:[#allocation5] sm:$0xff]
    %v60 = vld [vmem:[#allocation5 + $0x8] sm:$0xff]
    %v61 = vld [vmem:[#allocation5 + $0x10] sm:$0xff]
    %v62 = vld [vmem:[#allocation5 + $0x18] sm:$0xff]
    %v63 = vld [vmem:[#allocation5 + $0x20] sm:$0xff]
    %v64 = vld [vmem:[#allocation5 + $0x28] sm:$0xff]
    %v65 = vld [vmem:[#allocation5 + $0x30] sm:$0xff]
    %v66 = vld [vmem:[#allocation5 + $0x38] sm:$0xff]
    %v67 = vld [vmem:[#allocation5 + $0x40] sm:$0xff]
    %v68 = vld [vmem:[#allocation5 + $0x48] sm:$0xff]
    %v69 = vld [vmem:[#allocation5 + $0x50] sm:$0xff]
    %v70 = vld [vmem:[#allocation5 + $0x58] sm:$0xff]
    %v71 = vld [vmem:[#allocation5 + $0x60] sm:$0xff]
    %v72 = vld [vmem:[#allocation5 + $0x68] sm:$0xff]
    %v73 = vld [vmem:[#allocation5 + $0x70] sm:$0xff]
    %v74 = vld [vmem:[#allocation5 + $0x78] sm:$0xff]
    %v75 = vmul.f32 %v43, %v43
    %v76 = vmul.f32 %v44, %v44
    %v77 = vmul.f32 %v45, %v45
    %v78 = vmul.f32 %v46, %v46
    %v79 = vmul.f32 %v47, %v47
    %v80 = vmul.f32 %v48, %v48
    %v81 = vmul.f32 %v49, %v49
    %v82 = vmul.f32 %v50, %v50
    %v83 = vmul.f32 %v51, %v51
    %v84 = vmul.f32 %v52, %v52
    %v85 = vmul.f32 %v53, %v53
    %v86 = vmul.f32 %v54, %v54
    %v87 = vmul.f32 %v55, %v55
    %v88 = vmul.f32 %v56, %v56
    %v89 = vmul.f32 %v57, %v57
    %v90 = vmul.f32 %v58, %v58
    %91 = vadd.xlane.f32.xlu0 %v75
    %v92 = vpop.xlane.xlu0 %91
    %93 = vadd.xlane.f32.xlu0 %v76
    %v94 = vpop.xlane.xlu0 %93
    %95 = vadd.xlane.f32.xlu0 %v77
    %v96 = vpop.xlane.xlu0 %95
    %97 = vadd.xlane.f32.xlu0 %v78
    %v98 = vpop.xlane.xlu0 %97
    %99 = vadd.xlane.f32.xlu0 %v79
    %v100 = vpop.xlane.xlu0 %99
    %101 = vadd.xlane.f32.xlu0 %v80
    %v102 = vpop.xlane.xlu0 %101
    %103 = vadd.xlane.f32.xlu0 %v81
    %v104 = vpop.xlane.xlu0 %103
    %105 = vadd.xlane.f32.xlu0 %v82
    %v106 = vpop.xlane.xlu0 %105
    %107 = vadd.xlane.f32.xlu0 %v83
    %v108 = vpop.xlane.xlu0 %107
    %109 = vadd.xlane.f32.xlu0 %v84
    %v110 = vpop.xlane.xlu0 %109
    %111 = vadd.xlane.f32.xlu0 %v85
    %v112 = vpop.xlane.xlu0 %111
    %113 = vadd.xlane.f32.xlu0 %v86
    %v114 = vpop.xlane.xlu0 %113
    %115 = vadd.xlane.f32.xlu0 %v87
    %v116 = vpop.xlane.xlu0 %115
    %117 = vadd.xlane.f32.xlu0 %v88
    %v118 = vpop.xlane.xlu0 %117
    %119 = vadd.xlane.f32.xlu0 %v89
    %v120 = vpop.xlane.xlu0 %119
    %121 = vadd.xlane.f32.xlu0 %v90
    %v122 = vpop.xlane.xlu0 %121
    %v123 = vmax.f32 %v92, 1e-16
    %v124 = vmax.f32 %v94, 1e-16
    %v125 = vmax.f32 %v96, 1e-16
    %v126 = vmax.f32 %v98, 1e-16
    %v127 = vmax.f32 %v100, 1e-16
    %v128 = vmax.f32 %v102, 1e-16
    %v129 = vmax.f32 %v104, 1e-16
    %v130 = vmax.f32 %v106, 1e-16
    %v131 = vmax.f32 %v108, 1e-16
    %v132 = vmax.f32 %v110, 1e-16
    %v133 = vmax.f32 %v112, 1e-16
    %v134 = vmax.f32 %v114, 1e-16
    %v135 = vmax.f32 %v116, 1e-16
    %v136 = vmax.f32 %v118, 1e-16
    %v137 = vmax.f32 %v120, 1e-16
    %v138 = vmax.f32 %v122, 1e-16
    %v139 = vrsqrt.pop %v123
    %v140 = vrsqrt.pop %v124
    %v141 = vrsqrt.pop %v125
    %v142 = vrsqrt.pop %v126
    %v143 = vrsqrt.pop %v127
    %v144 = vrsqrt.pop %v128
    %v145 = vrsqrt.pop %v129
    %v146 = vrsqrt.pop %v130
    %v147 = vrsqrt.pop %v131
    %v148 = vrsqrt.pop %v132
    %v149 = vrsqrt.pop %v133
    %v150 = vrsqrt.pop %v134
    %v151 = vrsqrt.pop %v135
    %v152 = vrsqrt.pop %v136
    %v153 = vrsqrt.pop %v137
    %v154 = vrsqrt.pop %v138
    %v155 = vmul.f32 %v59, %v59
    %v156 = vmul.f32 %v60, %v60
    %v157 = vmul.f32 %v61, %v61
    %v158 = vmul.f32 %v62, %v62
    %v159 = vmul.f32 %v63, %v63
    %v160 = vmul.f32 %v64, %v64
    %v161 = vmul.f32 %v65, %v65
    %v162 = vmul.f32 %v66, %v66
    %v163 = vmul.f32 %v67, %v67
    %v164 = vmul.f32 %v68, %v68
    %v165 = vmul.f32 %v69, %v69
    %v166 = vmul.f32 %v70, %v70
    %v167 = vmul.f32 %v71, %v71
    %v168 = vmul.f32 %v72, %v72
    %v169 = vmul.f32 %v73, %v73
    %v170 = vmul.f32 %v74, %v74
    %171 = vadd.xlane.f32.xlu0 %v155
    %v172 = vpop.xlane.xlu0 %171
    %173 = vadd.xlane.f32.xlu0 %v156
    %v174 = vpop.xlane.xlu0 %173
    %175 = vadd.xlane.f32.xlu0 %v157
    %v176 = vpop.xlane.xlu0 %175
    %177 = vadd.xlane.f32.xlu0 %v158
    %v178 = vpop.xlane.xlu0 %177
    %179 = vadd.xlane.f32.xlu0 %v159
    %v180 = vpop.xlane.xlu0 %179
    %181 = vadd.xlane.f32.xlu0 %v160
    %v182 = vpop.xlane.xlu0 %181
    %183 = vadd.xlane.f32.xlu0 %v161
    %v184 = vpop.xlane.xlu0 %183
    %185 = vadd.xlane.f32.xlu0 %v162
    %v186 = vpop.xlane.xlu0 %185
    %187 = vadd.xlane.f32.xlu0 %v163
    %v188 = vpop.xlane.xlu0 %187
    %189 = vadd.xlane.f32.xlu0 %v164
    %v190 = vpop.xlane.xlu0 %189
    %191 = vadd.xlane.f32.xlu0 %v165
    %v192 = vpop.xlane.xlu0 %191
    %193 = vadd.xlane.f32.xlu0 %v166
    %v194 = vpop.xlane.xlu0 %193
    %195 = vadd.xlane.f32.xlu0 %v167
    %v196 = vpop.xlane.xlu0 %195
    %197 = vadd.xlane.f32.xlu0 %v168
    %v198 = vpop.xlane.xlu0 %197
    %199 = vadd.xlane.f32.xlu0 %v169
    %v200 = vpop.xlane.xlu0 %199
    %201 = vadd.xlane.f32.xlu0 %v170
    %v202 = vpop.xlane.xlu0 %201
    %v203 = vmax.f32 %v172, 1e-16
    %v204 = vmax.f32 %v174, 1e-16
    %v205 = vmax.f32 %v176, 1e-16
    %v206 = vmax.f32 %v178, 1e-16
    %v207 = vmax.f32 %v180, 1e-16
    %v208 = vmax.f32 %v182, 1e-16
    %v209 = vmax.f32 %v184, 1e-16
    %v210 = vmax.f32 %v186, 1e-16
    %v211 = vmax.f32 %v188, 1e-16
    %v212 = vmax.f32 %v190, 1e-16
    %v213 = vmax.f32 %v192, 1e-16
    %v214 = vmax.f32 %v194, 1e-16
    %v215 = vmax.f32 %v196, 1e-16
    %v216 = vmax.f32 %v198, 1e-16
    %v217 = vmax.f32 %v200, 1e-16
    %v218 = vmax.f32 %v202, 1e-16
    %v219 = vrsqrt.pop %v203
    %v220 = vrsqrt.pop %v204
    %v221 = vrsqrt.pop %v205
    %v222 = vrsqrt.pop %v206
    %v223 = vrsqrt.pop %v207
    %v224 = vrsqrt.pop %v208
    %v225 = vrsqrt.pop %v209
    %v226 = vrsqrt.pop %v210
    %v227 = vrsqrt.pop %v211
    %v228 = vrsqrt.pop %v212
    %v229 = vrsqrt.pop %v213
    %v230 = vrsqrt.pop %v214
    %v231 = vrsqrt.pop %v215
    %v232 = vrsqrt.pop %v216
    %v233 = vrsqrt.pop %v217
    %v234 = vrsqrt.pop %v218
    %v235 = vmul.f32 %v139, 14.285714
    %v236 = vmul.f32 %v140, 14.285714
    %v237 = vmul.f32 %v141, 14.285714
    %v238 = vmul.f32 %v142, 14.285714
    %v239 = vmul.f32 %v143, 14.285714
    %v240 = vmul.f32 %v144, 14.285714
    %v241 = vmul.f32 %v145, 14.285714
    %v242 = vmul.f32 %v146, 14.285714
    %v243 = vmul.f32 %v147, 14.285714
    %v244 = vmul.f32 %v148, 14.285714
    %v245 = vmul.f32 %v149, 14.285714
    %v246 = vmul.f32 %v150, 14.285714
    %v247 = vmul.f32 %v151, 14.285714
    %v248 = vmul.f32 %v152, 14.285714
    %v249 = vmul.f32 %v153, 14.285714
    %v250 = vmul.f32 %v154, 14.285714
    %v251 = vmul.f32 %v43, %v235
    %v252 = vmul.f32 %v44, %v236
    %v253 = vmul.f32 %v45, %v237
    %v254 = vmul.f32 %v46, %v238
    %v255 = vmul.f32 %v47, %v239
    %v256 = vmul.f32 %v48, %v240
    %v257 = vmul.f32 %v49, %v241
    %v258 = vmul.f32 %v50, %v242
    %v259 = vmul.f32 %v51, %v243
    %v260 = vmul.f32 %v52, %v244
    %v261 = vmul.f32 %v53, %v245
    %v262 = vmul.f32 %v54, %v246
    %v263 = vmul.f32 %v55, %v247
    %v264 = vmul.f32 %v56, %v248
    %v265 = vmul.f32 %v57, %v249
    %v266 = vmul.f32 %v58, %v250
    %267 = vst [vmem:[#allocation7] sm:$0xff] %v251
    %268 = vst [vmem:[#allocation7 + $0x8] sm:$0xff] %v252
    %269 = vst [vmem:[#allocation7 + $0x10] sm:$0xff] %v253
    %270 = vst [vmem:[#allocation7 + $0x18] sm:$0xff] %v254
    %271 = vst [vmem:[#allocation7 + $0x20] sm:$0xff] %v255
    %272 = vst [vmem:[#allocation7 + $0x28] sm:$0xff] %v256
    %273 = vst [vmem:[#allocation7 + $0x30] sm:$0xff] %v257
    %274 = vst [vmem:[#allocation7 + $0x38] sm:$0xff] %v258
    %275 = vst [vmem:[#allocation7 + $0x40] sm:$0xff] %v259
    %276 = vst [vmem:[#allocation7 + $0x48] sm:$0xff] %v260
    %277 = vst [vmem:[#allocation7 + $0x50] sm:$0xff] %v261
    %278 = vst [vmem:[#allocation7 + $0x58] sm:$0xff] %v262
    %279 = vst [vmem:[#allocation7 + $0x60] sm:$0xff] %v263
    %280 = vst [vmem:[#allocation7 + $0x68] sm:$0xff] %v264
    %281 = vst [vmem:[#allocation7 + $0x70] sm:$0xff] %v265
    %282 = vst [vmem:[#allocation7 + $0x78] sm:$0xff] %v266
    %v283 = vmul.f32 %v59, %v219
    %v284 = vmul.f32 %v60, %v220
    %v285 = vmul.f32 %v61, %v221
    %v286 = vmul.f32 %v62, %v222
    %v287 = vmul.f32 %v63, %v223
    %v288 = vmul.f32 %v64, %v224
    %v289 = vmul.f32 %v65, %v225
    %v290 = vmul.f32 %v66, %v226
    %v291 = vmul.f32 %v67, %v227
    %v292 = vmul.f32 %v68, %v228
    %v293 = vmul.f32 %v69, %v229
    %v294 = vmul.f32 %v70, %v230
    %v295 = vmul.f32 %v71, %v231
    %v296 = vmul.f32 %v72, %v232
    %v297 = vmul.f32 %v73, %v233
    %v298 = vmul.f32 %v74, %v234
    %299 = vst [vmem:[#allocation8] sm:$0xff] %v283
    %300 = vst [vmem:[#allocation8 + $0x8] sm:$0xff] %v284
    %301 = vst [vmem:[#allocation8 + $0x10] sm:$0xff] %v285
    %302 = vst [vmem:[#allocation8 + $0x18] sm:$0xff] %v286
    %303 = vst [vmem:[#allocation8 + $0x20] sm:$0xff] %v287
    %304 = vst [vmem:[#allocation8 + $0x28] sm:$0xff] %v288
    %305 = vst [vmem:[#allocation8 + $0x30] sm:$0xff] %v289
    %306 = vst [vmem:[#allocation8 + $0x38] sm:$0xff] %v290
    %307 = vst [vmem:[#allocation8 + $0x40] sm:$0xff] %v291
    %308 = vst [vmem:[#allocation8 + $0x48] sm:$0xff] %v292
    %309 = vst [vmem:[#allocation8 + $0x50] sm:$0xff] %v293
    %310 = vst [vmem:[#allocation8 + $0x58] sm:$0xff] %v294
    %311 = vst [vmem:[#allocation8 + $0x60] sm:$0xff] %v295
    %312 = vst [vmem:[#allocation8 + $0x68] sm:$0xff] %v296
    %313 = vst [vmem:[#allocation8 + $0x70] sm:$0xff] %v297
    %314 = vst [vmem:[#allocation8 + $0x78] sm:$0xff] %v298
    // Predicated region
    $region18: #{tpu_custom_call.1} parent=1 // pred_check
      _
    $region19: #{tpu_custom_call.1} parent=1 // pred_check_branch
      %316 = sbr.rel (0) target = $region21
    $region20: #{tpu_custom_call.1} parent=1 // pred_region
      %s318 = ssub.s32 2048, 2048
      %319 = vsyncadd [#allocation4], %s318
      %s320 = sshll.u32 [#allocation7], 4
      %s321 = int_to_ptr.vmem [resolvable:$true] %s320
      %326 = dma.vmem_to_hbm [thread:$0]  %s321, 2048, %s2, [#allocation4], 128, 128, 8
    $region21: #{tpu_custom_call.1} parent=1 // pred_fallthru
      _
    // Predicated region
    $region22: #{tpu_custom_call.1} parent=1 // pred_check
      _
    $region23: #{tpu_custom_call.1} parent=1 // pred_check_branch
      %328 = sbr.rel (0) target = $region25
    $region24: #{tpu_custom_call.1} parent=1 // pred_region
      %s330 = ssub.s32 2048, 2048
      %331 = vsyncadd [#allocation9], %s330
      %s332 = sshll.u32 [#allocation8], 4
      %s333 = int_to_ptr.vmem [resolvable:$true] %s332
      %338 = dma.vmem_to_hbm [thread:$0]  %s333, 2048, %s3, [#allocation9], 128, 128, 8
    $region25: #{tpu_custom_call.1} parent=1 // pred_fallthru
      _
    // Predicated region
    $region26: #{tpu_custom_call.1} parent=1 // pred_check
      _
    $region27: #{tpu_custom_call.1} parent=1 // pred_check_branch
      %340 = sbr.rel (0) target = $region29
    $region28: #{tpu_custom_call.1} parent=1 // pred_region
      %341 = dma.done [#allocation4], 2048
    $region29: #{tpu_custom_call.1} parent=1 // pred_fallthru
      _
    // Predicated region
    $region30: #{tpu_custom_call.1} parent=1 // pred_check
      _
    $region31: #{tpu_custom_call.1} parent=1 // pred_check_branch
      %343 = sbr.rel (0) target = $region33
    $region32: #{tpu_custom_call.1} parent=1 // pred_region
      %344 = dma.done [#allocation9], 2048
    $region33: #{tpu_custom_call.1} parent=1 // pred_fallthru
      _
    %345 = vsyncpa [#allocation3], 1
    %346 = vsyncpa [#allocation6], 1
    %347 = vsyncpa [#allocation4], 1
    %348 = vsyncpa [#allocation9], 1

</llo_original>
